<compile_context>
chip_gen: v7x
topology: tpu7x:2x2x1
jax: 0.10.0
libtpu: 0.0.40
codegen_flags: <defaults>
</compile_context>

<pallas_src>
import jax
import jax.numpy as jnp
from jax import lax
from jax.experimental import pallas as pl
from jax.experimental.pallas import tpu as pltpu


# ConvTranspose2d(k=4, s=2, p=1):
#   out[co, 2i+a, 2j+b] = b2[co]
#     + sum_{dh,dw,cm} y1[cm, i+a+dh-1, j+b+dw-1] * w2[cm, co, KM[a][dh], KM[b][dw]]
# (y1 index out of range -> 0).  Shift (u, v) = (a+dh-1, b+dw-1) in {-1,0,1}^2.
_KM = ((3, 1), (2, 0))


def _make_fused_kernel(H, W, Cin, Cmid, Cout):
    HW = H * W
    PAD = W + 1                      # max |u*W + v| = W + 1
    P = 4 * Cout                     # parities x output channels

    def kernel(cols_ref, w1_ref, b1_ref, w2_ref, b2_ref, o_ref,
               y1p_ref, ys_ref):
        # cols_ref: (1, 9*Cin, HW)  bf16   im2col of the padded input
        # w1_ref  : (Cmid, 9*Cin)   bf16
        # b1_ref  : (Cmid, 1)       f32
        # w2_ref  : (P, 9*Cmid)     bf16   parity/tap-folded deconv weight
        # b2_ref  : (P, 1)          f32
        # o_ref   : (1, P, HW)      f32    lane-dense parity-major output
        # y1p_ref : (Cmid, HW + 2*PAD) f32 scratch: y1 flat with zero borders
        # ys_ref  : (9*Cmid, HW)    f32    scratch: assembled stage-2 operand

        # Zero only the two PAD-wide borders (interior is fully rewritten every
        # step).  Done unconditionally: scratch is per-core under "parallel".
        y1p_ref[:, :PAD] = jnp.zeros((Cmid, PAD), jnp.float32)
        y1p_ref[:, PAD + HW:] = jnp.zeros((Cmid, PAD), jnp.float32)

        # ---- stage 1: one MXU matmul (Cmid, 9Cin) @ (9Cin, HW) + bias + ReLU
        y1 = jnp.dot(w1_ref[...], cols_ref[0],
                     preferred_element_type=jnp.float32)          # (Cmid, HW)
        y1 = jnp.maximum(y1 + b1_ref[...], 0.0)
        y1p_ref[:, PAD:PAD + HW] = y1

        # ---- column-edge masks (only v = +/-1 shifts need them; row edges
        #      are handled by the zero borders of the flat pad buffer).
        kcol = lax.broadcasted_iota(jnp.int32, (Cmid, HW), 1)
        if W & (W - 1) == 0:
            jcol = jnp.bitwise_and(kcol, W - 1)
        else:                         # non power-of-two W fallback
            jcol = kcol % W
        not_left = jcol > 0           # valid when reading column j-1
        not_right = jcol < (W - 1)    # valid when reading column j+1

        # ---- assemble shared shifted-y1 operand (9*Cmid, HW) ----------------
        for u in (-1, 0, 1):
            for v in (-1, 0, 1):
                t = (u + 1) * 3 + (v + 1)
                s = u * W + v
                blk = y1p_ref[:, PAD + s:PAD + s + HW]            # (Cmid, HW)
                if v == -1:
                    blk = jnp.where(not_left, blk, 0.0)
                elif v == 1:
                    blk = jnp.where(not_right, blk, 0.0)
                ys_ref[t * Cmid:(t + 1) * Cmid, :] = blk

        # ---- stage 2: one MXU matmul (P, 9Cmid) @ (9Cmid, HW) + bias + ReLU
        y1s = ys_ref[...].astype(jnp.bfloat16)                    # single cast
        acc2 = jnp.dot(w2_ref[...], y1s,
                       preferred_element_type=jnp.float32)        # (P, HW)
        o_ref[0] = jnp.maximum(acc2 + b2_ref[...], 0.0).astype(o_ref.dtype)

    return kernel


def _stage1_weight(w1):
    """(Cmid, Cin, 3, 3) torch Conv2d weight -> (Cmid, 9*Cin), tap-major."""
    Cmid, Cin = w1.shape[0], w1.shape[1]
    return jnp.transpose(w1, (0, 2, 3, 1)).reshape(Cmid, 9 * Cin)


def _stage2_weight(w2):
    """(Cmid, Cout, 4, 4) torch ConvTranspose2d weight -> (4*Cout, 9*Cmid):
    rows = parity p = 2a+b (x Cout), cols = shift t = (u+1)*3+(v+1) (x Cmid)."""
    Cmid, Cout = w2.shape[0], w2.shape[1]
    zero = jnp.zeros((Cout, Cmid), w2.dtype)
    rows = []
    for a in range(2):
        for b in range(2):
            blocks = []
            for u in (-1, 0, 1):
                for v in (-1, 0, 1):
                    dh, dw = u + 1 - a, v + 1 - b
                    if 0 <= dh <= 1 and 0 <= dw <= 1:
                        blocks.append(w2[:, :, _KM[a][dh], _KM[b][dw]].T)
                    else:
                        blocks.append(zero)
            rows.append(jnp.concatenate(blocks, axis=1))          # (Cout, 9*Cmid)
    return jnp.concatenate(rows, axis=0)                          # (4*Cout, 9*Cmid)


def decoder_block_v2_forward(x_nchw, params):
    """Forward pass of DecoderBlockV2(is_deconv=True). Input/Output: NCHW f32."""
    w1, b1, w2, b2 = params    # torch: (mid,in,3,3), (mid,), (mid,out,4,4), (out,)
    N, Cin, H, W = x_nchw.shape
    Cmid = w1.shape[0]
    Cout = w2.shape[1]
    HW = H * W
    P = 4 * Cout

    # ---- lane-dense im2col input: (N, 9*Cin, H*W) bf16 ----------------------
    xp = jnp.pad(x_nchw, ((0, 0), (0, 0), (1, 1), (1, 1)))
    cols = jnp.stack([xp[:, :, kh:kh + H, kw:kw + W]
                      for kh in range(3) for kw in range(3)], axis=1)
    cols = cols.reshape(N, 9 * Cin, HW).astype(jnp.bfloat16)

    # ---- folded weights / biases --------------------------------------------
    w1m = _stage1_weight(w1).astype(jnp.bfloat16)                 # (Cmid, 9*Cin)
    b1c = b1.reshape(Cmid, 1).astype(jnp.float32)
    w2m = _stage2_weight(w2).astype(jnp.bfloat16)                 # (P, 9*Cmid)
    b2c = jnp.tile(b2, 4).reshape(P, 1).astype(jnp.float32)

    kernel = _make_fused_kernel(H, W, Cin, Cmid, Cout)

    flops = 2 * N * HW * (Cmid * 9 * Cin + P * 9 * Cmid)
    bytes_accessed = (cols.size * 2 + w1m.size * 2 + w2m.size * 2
                      + b1c.size * 4 + b2c.size * 4 + N * P * HW * 4)

    out = pl.pallas_call(
        kernel,
        out_shape=jax.ShapeDtypeStruct((N, P, HW), jnp.float32),
        grid=(N,),
        in_specs=[
            pl.BlockSpec((1, 9 * Cin, HW), lambda n: (n, 0, 0)),
            pl.BlockSpec((Cmid, 9 * Cin), lambda n: (0, 0)),
            pl.BlockSpec((Cmid, 1), lambda n: (0, 0)),
            pl.BlockSpec((P, 9 * Cmid), lambda n: (0, 0)),
            pl.BlockSpec((P, 1), lambda n: (0, 0)),
        ],
        out_specs=pl.BlockSpec((1, P, HW), lambda n: (n, 0, 0)),
        scratch_shapes=[
            pltpu.VMEM((Cmid, HW + 2 * (W + 1)), jnp.float32),    # flat-padded y1
            pltpu.VMEM((9 * Cmid, HW), jnp.float32),              # stage-2 operand
        ],
        compiler_params=pltpu.CompilerParams(
            dimension_semantics=("parallel",)),
        cost_estimate=pl.CostEstimate(flops=flops, transcendentals=0,
                                      bytes_accessed=bytes_accessed),
    )(cols, w1m, b1c, w2m, b2c)

    # Parity-major (N, 2, 2, Cout, H, W) -> NCHW (N, Cout, 2H, 2W).
    out = out.reshape(N, 2, 2, Cout, H, W)
    out = jnp.transpose(out, (0, 3, 4, 1, 5, 2))   # (N, Cout, H, 2, W, 2)
    return out.reshape(N, Cout, 2 * H, 2 * W)


def reference_forward(x_nchw, params):
    """Pure-JAX (lax conv) reference, quantized at the same bf16 points as the
    Pallas kernel (inputs / weights / mid activation); f32 accumulation."""
    w1, b1, w2, b2 = params
    f32 = jnp.float32
    x = jnp.transpose(x_nchw, (0, 2, 3, 1)).astype(jnp.bfloat16).astype(f32)
    w1q = w1.astype(jnp.bfloat16).astype(f32)
    w2q = w2.astype(jnp.bfloat16).astype(f32)

    w1_hwio = jnp.transpose(w1q, (2, 3, 1, 0))
    y1 = lax.conv_general_dilated(
        x, w1_hwio, window_strides=(1, 1), padding=((1, 1), (1, 1)),
        dimension_numbers=("NHWC", "HWIO", "NHWC"))
    y1 = jnp.maximum(y1 + b1, 0.0)
    y1 = y1.astype(jnp.bfloat16).astype(f32)       # kernel feeds y1 to MXU in bf16

    w2_hwio = jnp.transpose(w2q[:, :, ::-1, ::-1], (2, 3, 0, 1))
    y2 = lax.conv_general_dilated(
        y1, w2_hwio, window_strides=(1, 1), padding=((2, 2), (2, 2)),
        lhs_dilation=(2, 2), dimension_numbers=("NHWC", "HWIO", "NHWC"))
    y2 = jnp.maximum(y2 + b2, 0.0)
    return jnp.transpose(y2, (0, 3, 1, 2))


if __name__ == "__main__":
    # Small shapes consistent with the module: in=4, middle=8, out=4.
    N, Cin, Cmid, Cout, H, W = 2, 4, 8, 4, 16, 16

    key = jax.random.PRNGKey(0)
    k0, k1, k2, k3, k4 = jax.random.split(key, 5)
    x = jax.random.normal(k0, (N, Cin, H, W), jnp.float32)

    # Deterministic synthetic parameters (PyTorch layouts).
    w1 = 0.1 * jax.random.normal(k1, (Cmid, Cin, 3, 3), jnp.float32)
    b1 = 0.1 * jax.random.normal(k2, (Cmid,), jnp.float32)
    w2 = 0.1 * jax.random.normal(k3, (Cmid, Cout, 4, 4), jnp.float32)
    b2 = 0.1 * jax.random.normal(k4, (Cout,), jnp.float32)
    params = (w1, b1, w2, b2)

    fwd = jax.jit(decoder_block_v2_forward)
    out = jax.block_until_ready(fwd(x, params))

    ref = reference_forward(x, params)
    assert out.shape == (N, Cout, 2 * H, 2 * W), out.shape
    err = float(jnp.max(jnp.abs(out - ref)))
    # Identical quantization points as the reference (bf16 x/w/y1, f32 bias and
    # accumulation); only f32 accumulation-order differences remain.
    assert err < 2e-3, err
    print("KERNEL_OK")
</pallas_src>

<mosaic_0001>
module attributes {stable_mosaic.version = 11 : i64} {
  func.func @kernel(%arg0: i32, %arg1: memref<1x36x256xbf16, #tpu.memory_space<vmem>>, %arg2: memref<8x36xbf16, #tpu.memory_space<vmem>>, %arg3: memref<8x1xf32, #tpu.memory_space<vmem>>, %arg4: memref<16x72xbf16, #tpu.memory_space<vmem>>, %arg5: memref<16x1xf32, #tpu.memory_space<vmem>>, %arg6: memref<1x16x256xf32, #tpu.memory_space<vmem>>, %arg7: memref<8x290xf32, #tpu.memory_space<vmem>>, %arg8: memref<72x256xf32, #tpu.memory_space<vmem>>) attributes {dimension_semantics = [#tpu.dimension_semantics<parallel>], iteration_bounds = array<i64: 2>, scalar_prefetch = 0 : i64, scratch_operands = 2 : i64, tpu.core_type = #tpu.core_type<tc>, window_params = [{transform_indices = @transform_0, window_bounds = array<i64: 1, 36, 256>}, {pipeline_mode = #tpu.pipeline_mode<synchronous>, transform_indices = @transform_1, window_bounds = array<i64: 8, 36>}, {pipeline_mode = #tpu.pipeline_mode<synchronous>, transform_indices = @transform_2, window_bounds = array<i64: 8, 1>}, {pipeline_mode = #tpu.pipeline_mode<synchronous>, transform_indices = @transform_3, window_bounds = array<i64: 16, 72>}, {pipeline_mode = #tpu.pipeline_mode<synchronous>, transform_indices = @transform_4, window_bounds = array<i64: 16, 1>}, {transform_indices = @transform_5, window_bounds = array<i64: 1, 16, 256>}]} {
    %cst = arith.constant 0.000000e+00 : f32
    %0 = vector.broadcast %cst : f32 to vector<8x17xf32>
    %c0 = arith.constant 0 : index
    %c0_0 = arith.constant 0 : index
    %1 = vector.load %arg7[%c0, %c0_0] : memref<8x290xf32, #tpu.memory_space<vmem>>, vector<8x17xf32>
    tpu.vector_store %arg7[%c0, %c0_0], %0 {strides = array<i32>} : memref<8x290xf32, #tpu.memory_space<vmem>>, vector<8x17xf32>,
    %cst_1 = arith.constant 0.000000e+00 : f32
    %2 = vector.broadcast %cst_1 : f32 to vector<8x17xf32>
    %c0_2 = arith.constant 0 : index
    %c273 = arith.constant 273 : index
    %3 = vector.load %arg7[%c0_2, %c273] : memref<8x290xf32, #tpu.memory_space<vmem>>, vector<8x17xf32>
    tpu.vector_store %arg7[%c0_2, %c273], %2 {strides = array<i32>} : memref<8x290xf32, #tpu.memory_space<vmem>>, vector<8x17xf32>,
    %c0_3 = arith.constant 0 : index
    %c0_4 = arith.constant 0 : index
    %4 = vector.load %arg2[%c0_3, %c0_4] : memref<8x36xbf16, #tpu.memory_space<vmem>>, vector<8x36xbf16>
    %c0_5 = arith.constant 0 : index
    %c0_6 = arith.constant 0 : index
    %c0_7 = arith.constant 0 : index
    %5 = vector.load %arg1[%c0_5, %c0_6, %c0_7] : memref<1x36x256xbf16, #tpu.memory_space<vmem>>, vector<1x36x256xbf16>
    %6 = vector.shape_cast %5 : vector<1x36x256xbf16> to vector<36x256xbf16>
    %cst_8 = arith.constant dense<0.000000e+00> : vector<8x256xf32>
    %7 = tpu.matmul %4, %6, %cst_8 {dimension_numbers = #tpu.dot_dimension_numbers<[1], [0], [0], [1], [0, 0, 1, 1], [], []>} : vector<8x36xbf16>, vector<36x256xbf16>, vector<8x256xf32> -> vector<8x256xf32>
    %c0_9 = arith.constant 0 : index
    %c0_10 = arith.constant 0 : index
    %8 = vector.load %arg3[%c0_9, %c0_10] : memref<8x1xf32, #tpu.memory_space<vmem>>, vector<8x1xf32>
    %9 = vector.broadcast %8 : vector<8x1xf32> to vector<8x256xf32>
    %10 = arith.addf %7, %9 : vector<8x256xf32>
    %cst_11 = arith.constant 0.000000e+00 : f32
    %11 = vector.broadcast %cst_11 : f32 to vector<8x256xf32>
    %12 = arith.maximumf %10, %11 : vector<8x256xf32>
    %c0_12 = arith.constant 0 : index
    %c17 = arith.constant 17 : index
    %13 = vector.load %arg7[%c0_12, %c17] : memref<8x290xf32, #tpu.memory_space<vmem>>, vector<8x256xf32>
    tpu.vector_store %arg7[%c0_12, %c17], %12 {strides = array<i32>} : memref<8x290xf32, #tpu.memory_space<vmem>>, vector<8x256xf32>,
    %14 = tpu.iota {dimensions = array<i32: 1>} : vector<8x256xi32>
    %c15_i32 = arith.constant 15 : i32
    %15 = vector.broadcast %c15_i32 : i32 to vector<8x256xi32>
    %16 = arith.andi %14, %15 : vector<8x256xi32>
    %c0_i32 = arith.constant 0 : i32
    %17 = vector.broadcast %c0_i32 : i32 to vector<8x256xi32>
    %18 = arith.cmpi sgt, %16, %17 : vector<8x256xi32>
    %c15_i32_13 = arith.constant 15 : i32
    %19 = vector.broadcast %c15_i32_13 : i32 to vector<8x256xi32>
    %20 = arith.cmpi slt, %16, %19 : vector<8x256xi32>
    %c0_14 = arith.constant 0 : index
    %c0_15 = arith.constant 0 : index
    %21 = vector.load %arg7[%c0_14, %c0_15] : memref<8x290xf32, #tpu.memory_space<vmem>>, vector<8x256xf32>
    %cst_16 = arith.constant 0.000000e+00 : f32
    %22 = vector.broadcast %cst_16 : f32 to vector<8x256xf32>
    %23 = arith.select %18, %21, %22 : vector<8x256xi1>, vector<8x256xf32>
    %c0_17 = arith.constant 0 : index
    %c0_18 = arith.constant 0 : index
    %24 = vector.load %arg8[%c0_17, %c0_18] : memref<72x256xf32, #tpu.memory_space<vmem>>, vector<8x256xf32>
    tpu.vector_store %arg8[%c0_17, %c0_18], %23 {strides = array<i32>} : memref<72x256xf32, #tpu.memory_space<vmem>>, vector<8x256xf32>,
    %c0_19 = arith.constant 0 : index
    %c1 = arith.constant 1 : index
    %25 = vector.load %arg7[%c0_19, %c1] : memref<8x290xf32, #tpu.memory_space<vmem>>, vector<8x256xf32>
    %c8 = arith.constant 8 : index
    %c0_20 = arith.constant 0 : index
    %26 = vector.load %arg8[%c8, %c0_20] : memref<72x256xf32, #tpu.memory_space<vmem>>, vector<8x256xf32>
    tpu.vector_store %arg8[%c8, %c0_20], %25 {strides = array<i32>} : memref<72x256xf32, #tpu.memory_space<vmem>>, vector<8x256xf32>,
    %c0_21 = arith.constant 0 : index
    %c2 = arith.constant 2 : index
    %27 = vector.load %arg7[%c0_21, %c2] : memref<8x290xf32, #tpu.memory_space<vmem>>, vector<8x256xf32>
    %cst_22 = arith.constant 0.000000e+00 : f32
    %28 = vector.broadcast %cst_22 : f32 to vector<8x256xf32>
    %29 = arith.select %20, %27, %28 : vector<8x256xi1>, vector<8x256xf32>
    %c16 = arith.constant 16 : index
    %c0_23 = arith.constant 0 : index
    %30 = vector.load %arg8[%c16, %c0_23] : memref<72x256xf32, #tpu.memory_space<vmem>>, vector<8x256xf32>
    tpu.vector_store %arg8[%c16, %c0_23], %29 {strides = array<i32>} : memref<72x256xf32, #tpu.memory_space<vmem>>, vector<8x256xf32>,
    %c0_24 = arith.constant 0 : index
    %c16_25 = arith.constant 16 : index
    %31 = vector.load %arg7[%c0_24, %c16_25] : memref<8x290xf32, #tpu.memory_space<vmem>>, vector<8x256xf32>
    %cst_26 = arith.constant 0.000000e+00 : f32
    %32 = vector.broadcast %cst_26 : f32 to vector<8x256xf32>
    %33 = arith.select %18, %31, %32 : vector<8x256xi1>, vector<8x256xf32>
    %c24 = arith.constant 24 : index
    %c0_27 = arith.constant 0 : index
    %34 = vector.load %arg8[%c24, %c0_27] : memref<72x256xf32, #tpu.memory_space<vmem>>, vector<8x256xf32>
    tpu.vector_store %arg8[%c24, %c0_27], %33 {strides = array<i32>} : memref<72x256xf32, #tpu.memory_space<vmem>>, vector<8x256xf32>,
    %c0_28 = arith.constant 0 : index
    %c17_29 = arith.constant 17 : index
    %35 = vector.load %arg7[%c0_28, %c17_29] : memref<8x290xf32, #tpu.memory_space<vmem>>, vector<8x256xf32>
    %c32 = arith.constant 32 : index
    %c0_30 = arith.constant 0 : index
    %36 = vector.load %arg8[%c32, %c0_30] : memref<72x256xf32, #tpu.memory_space<vmem>>, vector<8x256xf32>
    tpu.vector_store %arg8[%c32, %c0_30], %35 {strides = array<i32>} : memref<72x256xf32, #tpu.memory_space<vmem>>, vector<8x256xf32>,
    %c0_31 = arith.constant 0 : index
    %c18 = arith.constant 18 : index
    %37 = vector.load %arg7[%c0_31, %c18] : memref<8x290xf32, #tpu.memory_space<vmem>>, vector<8x256xf32>
    %cst_32 = arith.constant 0.000000e+00 : f32
    %38 = vector.broadcast %cst_32 : f32 to vector<8x256xf32>
    %39 = arith.select %20, %37, %38 : vector<8x256xi1>, vector<8x256xf32>
    %c40 = arith.constant 40 : index
    %c0_33 = arith.constant 0 : index
    %40 = vector.load %arg8[%c40, %c0_33] : memref<72x256xf32, #tpu.memory_space<vmem>>, vector<8x256xf32>
    tpu.vector_store %arg8[%c40, %c0_33], %39 {strides = array<i32>} : memref<72x256xf32, #tpu.memory_space<vmem>>, vector<8x256xf32>,
    %c0_34 = arith.constant 0 : index
    %c32_35 = arith.constant 32 : index
    %41 = vector.load %arg7[%c0_34, %c32_35] : memref<8x290xf32, #tpu.memory_space<vmem>>, vector<8x256xf32>
    %cst_36 = arith.constant 0.000000e+00 : f32
    %42 = vector.broadcast %cst_36 : f32 to vector<8x256xf32>
    %43 = arith.select %18, %41, %42 : vector<8x256xi1>, vector<8x256xf32>
    %c48 = arith.constant 48 : index
    %c0_37 = arith.constant 0 : index
    %44 = vector.load %arg8[%c48, %c0_37] : memref<72x256xf32, #tpu.memory_space<vmem>>, vector<8x256xf32>
    tpu.vector_store %arg8[%c48, %c0_37], %43 {strides = array<i32>} : memref<72x256xf32, #tpu.memory_space<vmem>>, vector<8x256xf32>,
    %c0_38 = arith.constant 0 : index
    %c33 = arith.constant 33 : index
    %45 = vector.load %arg7[%c0_38, %c33] : memref<8x290xf32, #tpu.memory_space<vmem>>, vector<8x256xf32>
    %c56 = arith.constant 56 : index
    %c0_39 = arith.constant 0 : index
    %46 = vector.load %arg8[%c56, %c0_39] : memref<72x256xf32, #tpu.memory_space<vmem>>, vector<8x256xf32>
    tpu.vector_store %arg8[%c56, %c0_39], %45 {strides = array<i32>} : memref<72x256xf32, #tpu.memory_space<vmem>>, vector<8x256xf32>,
    %c0_40 = arith.constant 0 : index
    %c34 = arith.constant 34 : index
    %47 = vector.load %arg7[%c0_40, %c34] : memref<8x290xf32, #tpu.memory_space<vmem>>, vector<8x256xf32>
    %cst_41 = arith.constant 0.000000e+00 : f32
    %48 = vector.broadcast %cst_41 : f32 to vector<8x256xf32>
    %49 = arith.select %20, %47, %48 : vector<8x256xi1>, vector<8x256xf32>
    %c64 = arith.constant 64 : index
    %c0_42 = arith.constant 0 : index
    %50 = vector.load %arg8[%c64, %c0_42] : memref<72x256xf32, #tpu.memory_space<vmem>>, vector<8x256xf32>
    tpu.vector_store %arg8[%c64, %c0_42], %49 {strides = array<i32>} : memref<72x256xf32, #tpu.memory_space<vmem>>, vector<8x256xf32>,
    %c0_43 = arith.constant 0 : index
    %c0_44 = arith.constant 0 : index
    %51 = vector.load %arg8[%c0_43, %c0_44] : memref<72x256xf32, #tpu.memory_space<vmem>>, vector<72x256xf32>
    %52 = arith.truncf %51 : vector<72x256xf32> to vector<72x256xbf16>
    %c0_45 = arith.constant 0 : index
    %c0_46 = arith.constant 0 : index
    %53 = vector.load %arg4[%c0_45, %c0_46] : memref<16x72xbf16, #tpu.memory_space<vmem>>, vector<16x72xbf16>
    %cst_47 = arith.constant dense<0.000000e+00> : vector<16x256xf32>
    %54 = tpu.matmul %53, %52, %cst_47 {dimension_numbers = #tpu.dot_dimension_numbers<[1], [0], [0], [1], [0, 0, 1, 1], [], []>} : vector<16x72xbf16>, vector<72x256xbf16>, vector<16x256xf32> -> vector<16x256xf32>
    %c0_48 = arith.constant 0 : index
    %c0_49 = arith.constant 0 : index
    %55 = vector.load %arg5[%c0_48, %c0_49] : memref<16x1xf32, #tpu.memory_space<vmem>>, vector<16x1xf32>
    %56 = vector.broadcast %55 : vector<16x1xf32> to vector<16x256xf32>
    %57 = arith.addf %54, %56 : vector<16x256xf32>
    %cst_50 = arith.constant 0.000000e+00 : f32
    %58 = vector.broadcast %cst_50 : f32 to vector<16x256xf32>
    %59 = arith.maximumf %57, %58 : vector<16x256xf32>
    %c0_51 = arith.constant 0 : index
    %c0_52 = arith.constant 0 : index
    %c0_53 = arith.constant 0 : index
    %60 = vector.load %arg6[%c0_51, %c0_52, %c0_53] : memref<1x16x256xf32, #tpu.memory_space<vmem>>, vector<1x16x256xf32>
    %61 = vector.shape_cast %60 : vector<1x16x256xf32> to vector<16x256xf32>
    %62 = vector.shape_cast %59 : vector<16x256xf32> to vector<1x16x256xf32>
    tpu.vector_store %arg6[%c0_51, %c0_52, %c0_53], %62 {strides = array<i32>} : memref<1x16x256xf32, #tpu.memory_space<vmem>>, vector<1x16x256xf32>,
    return
  }
  func.func @transform_0(%arg0: i32) -> (i32, i32, i32) {
    %c0_i32 = arith.constant 0 : i32
    %c0_i32_0 = arith.constant 0 : i32
    %c0_i32_1 = arith.constant 0 : i32
    return %arg0, %c0_i32, %c0_i32_0 : i32, i32, i32
  }
  func.func @transform_1(%arg0: i32) -> (i32, i32) {
    %c0_i32 = arith.constant 0 : i32
    %c0_i32_0 = arith.constant 0 : i32
    %c0_i32_1 = arith.constant 0 : i32
    return %c0_i32, %c0_i32_0 : i32, i32
  }
  func.func @transform_2(%arg0: i32) -> (i32, i32) {
    %c0_i32 = arith.constant 0 : i32
    %c0_i32_0 = arith.constant 0 : i32
    %c0_i32_1 = arith.constant 0 : i32
    return %c0_i32, %c0_i32_0 : i32, i32
  }
  func.func @transform_3(%arg0: i32) -> (i32, i32) {
    %c0_i32 = arith.constant 0 : i32
    %c0_i32_0 = arith.constant 0 : i32
    %c0_i32_1 = arith.constant 0 : i32
    return %c0_i32, %c0_i32_0 : i32, i32
  }
  func.func @transform_4(%arg0: i32) -> (i32, i32) {
    %c0_i32 = arith.constant 0 : i32
    %c0_i32_0 = arith.constant 0 : i32
    %c0_i32_1 = arith.constant 0 : i32
    return %c0_i32, %c0_i32_0 : i32, i32
  }
  func.func @transform_5(%arg0: i32) -> (i32, i32, i32) {
    %c0_i32 = arith.constant 0 : i32
    %c0_i32_0 = arith.constant 0 : i32
    %c0_i32_1 = arith.constant 0 : i32
    return %arg0, %c0_i32, %c0_i32_0 : i32, i32, i32
  }
}

</mosaic_0001>

<llo_original>
// kernel: tile.8
$region0: #{tile.8}
  #allocation0 [shape = 's32[1]{0}', space=sflag, size = 0x4, scoped, tag = 'scoped memory for tile.8']
  %s0 = inlined_call_operand.vmem [shape: f32[4], index: 0, kind: input, shape index: {}]
  %s1 = inlined_call_operand.vmem [shape: f32[4,4], index: 1, kind: output, shape index: {}]
  // Predicated region
  $region2: #{tile.8} parent=0 // pred_check
    _
  $region3: #{tile.8} parent=0 // pred_check_branch
    %3 = sbr.rel (0) target = $region5
  $region4: #{tile.8} parent=0 // pred_region
    _
  $region5: #{tile.8} parent=0 // pred_fallthru
    _
  %v4 = vld [vmem:[%s0] ss:$0 sm:$0xff]
  %5 = vst [vmem:[%s1] sm:$0xf] %v4

// kernel: tile.0
$region0: #{tile.0}
  %s0 = inlined_call_operand.vmem [shape: f32[4,4], index: 0, kind: input, shape index: {}]
  %s1 = inlined_call_operand.vmem [shape: f32[16,1], index: 1, kind: output, shape index: {}]
  $region1: #{tile.0} parent=0
    #allocation0 [shape = 'u8[4096]{0}', space=vmem, size = 0x1000, scoped, tag = 'scoped mem for input reshape']
    %s3 = sshllo.u32 0, 4
    %v4 = vld [vmem:[%s0] sm:%s3]
    %5 = vst [vmem:[#allocation0] sm:%s3] %v4
    %v6 = vld [vmem:[#allocation0] sm:$0xf]
    %vm7 = vcmask 7168
    %8 = vst.msk [vmem:[%s1] ss:$4 sm:$0xf] %vm7, %v6
    %v9 = vld [vmem:[#allocation0] sm:$0xf]
    %10 = vrot.lane.b32.xlu0 %v9, 127
    %v11 = vpop.permute.xlu0 %10
    %vm12 = vcmask 7168
    %s13 = scalar_lea.vmem %s1, 1
    %14 = vst.msk [vmem:[%s13] ss:$4 sm:$0xf] %vm12, %v11
    %v15 = vld [vmem:[#allocation0] sm:$0xf]
    %16 = vrot.lane.b32.xlu0 %v15, 126
    %v17 = vpop.permute.xlu0 %16
    %vm18 = vcmask 7168
    %s19 = scalar_lea.vmem %s1, 2
    %20 = vst.msk [vmem:[%s19] ss:$4 sm:$0xf] %vm18, %v17
    %v21 = vld [vmem:[#allocation0] sm:$0xf]
    %22 = vrot.lane.b32.xlu0 %v21, 125
    %v23 = vpop.permute.xlu0 %22
    %vm24 = vcmask 7168
    %s25 = scalar_lea.vmem %s1, 3
    %26 = vst.msk [vmem:[%s25] ss:$4 sm:$0xf] %vm24, %v23

// kernel: decoder_block_v2_forward.1
$region0: #{decoder_block_v2_forward.1}
  #allocation0 [shape = 'u32[]', space=smem, size = 0x4, offset = 0x4, fixed_abs, tag = 'smem constant byte address 0x4 - core index']
  #allocation1 [shape = 'u32[144,128]{1,0:T(1,128)}', space=vmem, size = 0x12000, scoped, tag = 'internal scratch']
  #allocation2 [shape = 'f32[8,290]{1,0:T(8,128)}', space=vmem, size = 0x3000, scoped, tag = 'scratch operand']
  #allocation3 [shape = 'f32[72,256]{1,0:T(8,128)}', space=vmem, size = 0x12000, scoped, tag = 'scratch operand']
  %s0 = inlined_call_operand.vmem [shape: bf16[2,36,256], index: 0, kind: input, shape index: {}]
  %s1 = inlined_call_operand.vmem [shape: bf16[8,36], index: 1, kind: input, shape index: {}]
  %s2 = inlined_call_operand.vmem [shape: f32[8,1], index: 2, kind: input, shape index: {}]
  %s3 = inlined_call_operand.vmem [shape: bf16[16,72], index: 3, kind: input, shape index: {}]
  %s4 = inlined_call_operand.vmem [shape: f32[16,1], index: 4, kind: input, shape index: {}]
  %s5 = inlined_call_operand.vmem [shape: f32[2,16,256], index: 5, kind: output, shape index: {}]
  %s6 = sld [smem:[#allocation0]]
  $region53: #{decoder_block_v2_forward.1} parent=0
    _
  %s8 = ssub.s32 1, %s6
  %s9 = scalar_select 0, %s8, %s6
  loop: start=0, step=1, limit=4
  $region2: #{decoder_block_v2_forward.1} parent=0 // loop_pre_header
    _
  $region3: #{decoder_block_v2_forward.1} parent=0 // loop_header
    %s11 = sphi 0, %s15
    %p12 = scmp.ge.s32.totalorder %s11, 4
    %s21 = sphi 0, %s23
    %s24 = sphi 0, %s21
    %s25 = sphi 0, %s24
    %s41 = sphi 0, %s25
    %s45 = sphi 0, %s45
    %s47 = sphi 0, %s45
    %s48 = sphi 0, %s47
    %s62 = sphi 0, %s48
    %s66 = sphi 0, %s66
    %s68 = sphi 0, %s66
    %s69 = sphi 0, %s68
    %s83 = sphi 0, %s69
    %s87 = sphi 0, %s87
    %s89 = sphi 0, %s87
    %s90 = sphi 0, %s89
    %s104 = sphi 0, %s90
    %s108 = sphi 0, %s108
    %s110 = sphi 0, %s108
    %s111 = sphi 0, %s110
    %s125 = sphi 0, %s111
    %s131 = sphi 0, %s133
    %s134 = sphi 0, %s131
    %s135 = sphi 0, %s134
    %s151 = sphi 0, %s135
  $region4: #{decoder_block_v2_forward.1} parent=0 // loop_header_branch
    %14 = sbr.rel (%p12) target = $region8
  $region5: #{decoder_block_v2_forward.1} parent=0 // loop_body
    %s16 = ssub.s32 %s11, 1
    %s17 = ssub.s32 %s11, 2
    %s18 = sadd.s32 %s11, 1
    %s19 = ssub.s32 %s11, %s18
    %p20 = scmp.eq.s32.totalorder %s19, 0
    %s22 = sadd.s32 %s21, 1
    %s23 = scalar_select %p20, %s21, %s22
    %p26 = pneg %p20
    %p27 = scmp.eq.s32.totalorder %s11, 1
    %p28 = por %p26, %p27
    %p29 = scmp.ne.s32.totalorder %s21, %s24
    %p30 = scmp.eq.s32.totalorder %s11, 0
    %p31 = por %p29, %p30
    %p32 = scmp.ne.s32.totalorder %s21, %s24
    %p33 = scmp.eq.s32.totalorder %s16, 1
    %p34 = por %p32, %p33
    %p35 = scmp.ne.s32.totalorder %s24, %s25
    %p36 = scmp.eq.s32.totalorder %s16, 0
    %p37 = por %p35, %p36
    %p38 = scmp.ne.s32.totalorder %s24, %s25
    %p39 = scmp.eq.s32.totalorder %s17, 1
    %p40 = por %p38, %p39
    %p42 = scmp.ne.s32.totalorder %s25, %s41
    %p43 = scmp.eq.s32.totalorder %s17, 0
    %p44 = por %p42, %p43
    %s46 = sadd.s32 %s45, 1
    %p49 = scmp.eq.s32.totalorder %s11, 1
    %p50 = scmp.ne.s32.totalorder %s45, %s47
    %p51 = scmp.eq.s32.totalorder %s11, 0
    %p52 = por %p50, %p51
    %p53 = scmp.ne.s32.totalorder %s45, %s47
    %p54 = scmp.eq.s32.totalorder %s16, 1
    %p55 = por %p53, %p54
    %p56 = scmp.ne.s32.totalorder %s47, %s48
    %p57 = scmp.eq.s32.totalorder %s16, 0
    %p58 = por %p56, %p57
    %p59 = scmp.ne.s32.totalorder %s47, %s48
    %p60 = scmp.eq.s32.totalorder %s17, 1
    %p61 = por %p59, %p60
    %p63 = scmp.ne.s32.totalorder %s48, %s62
    %p64 = scmp.eq.s32.totalorder %s17, 0
    %p65 = por %p63, %p64
    %s67 = sadd.s32 %s66, 1
    %p70 = scmp.eq.s32.totalorder %s11, 1
    %p71 = scmp.ne.s32.totalorder %s66, %s68
    %p72 = scmp.eq.s32.totalorder %s11, 0
    %p73 = por %p71, %p72
    %p74 = scmp.ne.s32.totalorder %s66, %s68
    %p75 = scmp.eq.s32.totalorder %s16, 1
    %p76 = por %p74, %p75
    %p77 = scmp.ne.s32.totalorder %s68, %s69
    %p78 = scmp.eq.s32.totalorder %s16, 0
    %p79 = por %p77, %p78
    %p80 = scmp.ne.s32.totalorder %s68, %s69
    %p81 = scmp.eq.s32.totalorder %s17, 1
    %p82 = por %p80, %p81
    %p84 = scmp.ne.s32.totalorder %s69, %s83
    %p85 = scmp.eq.s32.totalorder %s17, 0
    %p86 = por %p84, %p85
    %s88 = sadd.s32 %s87, 1
    %p91 = scmp.eq.s32.totalorder %s11, 1
    %p92 = scmp.ne.s32.totalorder %s87, %s89
    %p93 = scmp.eq.s32.totalorder %s11, 0
    %p94 = por %p92, %p93
    %p95 = scmp.ne.s32.totalorder %s87, %s89
    %p96 = scmp.eq.s32.totalorder %s16, 1
    %p97 = por %p95, %p96
    %p98 = scmp.ne.s32.totalorder %s89, %s90
    %p99 = scmp.eq.s32.totalorder %s16, 0
    %p100 = por %p98, %p99
    %p101 = scmp.ne.s32.totalorder %s89, %s90
    %p102 = scmp.eq.s32.totalorder %s17, 1
    %p103 = por %p101, %p102
    %p105 = scmp.ne.s32.totalorder %s90, %s104
    %p106 = scmp.eq.s32.totalorder %s17, 0
    %p107 = por %p105, %p106
    %s109 = sadd.s32 %s108, 1
    %p112 = scmp.eq.s32.totalorder %s11, 1
    %p113 = scmp.ne.s32.totalorder %s108, %s110
    %p114 = scmp.eq.s32.totalorder %s11, 0
    %p115 = por %p113, %p114
    %p116 = scmp.ne.s32.totalorder %s108, %s110
    %p117 = scmp.eq.s32.totalorder %s16, 1
    %p118 = por %p116, %p117
    %p119 = scmp.ne.s32.totalorder %s110, %s111
    %p120 = scmp.eq.s32.totalorder %s16, 0
    %p121 = por %p119, %p120
    %p122 = scmp.ne.s32.totalorder %s110, %s111
    %p123 = scmp.eq.s32.totalorder %s17, 1
    %p124 = por %p122, %p123
    %p126 = scmp.ne.s32.totalorder %s111, %s125
    %p127 = scmp.eq.s32.totalorder %s17, 0
    %p128 = por %p126, %p127
    %s129 = ssub.s32 %s11, %s18
    %p130 = scmp.eq.s32.totalorder %s129, 0
    %s132 = sadd.s32 %s131, 1
    %s133 = scalar_select %p130, %s131, %s132
    %p136 = pneg %p130
    %p137 = scmp.eq.s32.totalorder %s11, 1
    %p138 = por %p136, %p137
    %p139 = scmp.ne.s32.totalorder %s131, %s134
    %p140 = scmp.eq.s32.totalorder %s11, 0
    %p141 = por %p139, %p140
    %p142 = scmp.ne.s32.totalorder %s131, %s134
    %p143 = scmp.eq.s32.totalorder %s16, 1
    %p144 = por %p142, %p143
    %p145 = scmp.ne.s32.totalorder %s134, %s135
    %p146 = scmp.eq.s32.totalorder %s16, 0
    %p147 = por %p145, %p146
    %p148 = scmp.ne.s32.totalorder %s134, %s135
    %p149 = scmp.eq.s32.totalorder %s17, 1
    %p150 = por %p148, %p149
    %p152 = scmp.ne.s32.totalorder %s135, %s151
    %p153 = scmp.eq.s32.totalorder %s17, 0
    %p154 = por %p152, %p153
    %p155 = scmp.le.s32.totalorder 1, %s11
    %p156 = scmp.lt.s32.totalorder %s11, 3
    %p157 = pnand %p155, %p156
    %p158 = pneg %p157
    // Predicated region
    $region9: #{decoder_block_v2_forward.1} parent=5 // pred_check
      _
    $region10: #{decoder_block_v2_forward.1} parent=5 // pred_check_branch
      %160 = sbr.rel (%p157) target = $region12
    $region11: #{decoder_block_v2_forward.1} parent=5 // pred_region
      %s161 = ssub.s32 %s11, 1
      // Predicated region
      $region13: #{decoder_block_v2_forward.1} parent=11 // pred_check
        %p162 = pneg %p58
      $region14: #{decoder_block_v2_forward.1} parent=11 // pred_check_branch
        %164 = sbr.rel (%p162) target = $region16
      $region15: #{decoder_block_v2_forward.1} parent=11 // pred_region
        _
      $region16: #{decoder_block_v2_forward.1} parent=11 // pred_fallthru
        _
      // Predicated region
      $region17: #{decoder_block_v2_forward.1} parent=11 // pred_check
        %p165 = pneg %p79
      $region18: #{decoder_block_v2_forward.1} parent=11 // pred_check_branch
        %167 = sbr.rel (%p165) target = $region20
      $region19: #{decoder_block_v2_forward.1} parent=11 // pred_region
        _
      $region20: #{decoder_block_v2_forward.1} parent=11 // pred_fallthru
        _
      // Predicated region
      $region21: #{decoder_block_v2_forward.1} parent=11 // pred_check
        %p168 = pneg %p100
      $region22: #{decoder_block_v2_forward.1} parent=11 // pred_check_branch
        %170 = sbr.rel (%p168) target = $region24
      $region23: #{decoder_block_v2_forward.1} parent=11 // pred_region
        _
      $region24: #{decoder_block_v2_forward.1} parent=11 // pred_fallthru
        _
      // Predicated region
      $region25: #{decoder_block_v2_forward.1} parent=11 // pred_check
        %p171 = pneg %p121
      $region26: #{decoder_block_v2_forward.1} parent=11 // pred_check_branch
        %173 = sbr.rel (%p171) target = $region28
      $region27: #{decoder_block_v2_forward.1} parent=11 // pred_region
        _
      $region28: #{decoder_block_v2_forward.1} parent=11 // pred_fallthru
        _
    $region12: #{decoder_block_v2_forward.1} parent=5 // pred_fallthru
      _
    %p174 = scmp.lt.s32.totalorder %s11, 2
    // Predicated region
    $region29: #{decoder_block_v2_forward.1} parent=5 // pred_check
      %p175 = pneg %p174
    $region30: #{decoder_block_v2_forward.1} parent=5 // pred_check_branch
      %177 = sbr.rel (%p175) target = $region32
    $region31: #{decoder_block_v2_forward.1} parent=5 // pred_region
      // Predicated region
      $region33: #{decoder_block_v2_forward.1} parent=31 // pred_check
        %p178 = pneg %p31
      $region34: #{decoder_block_v2_forward.1} parent=31 // pred_check_branch
        %180 = sbr.rel (%p178) target = $region36
      $region35: #{decoder_block_v2_forward.1} parent=31 // pred_region
        %p181 = scmp.lt.s32.totalorder %s11, 1
        %s182 = scalar_select %p181, %s11, 1
        %s183 = smul.addr %s182, 10
        %s184 = smul.addr %s183, 4
        %s185 = scalar_lea.vmem %s0, %s184
      $region36: #{decoder_block_v2_forward.1} parent=31 // pred_fallthru
        _
    $region32: #{decoder_block_v2_forward.1} parent=5 // pred_fallthru
      _
    %p186 = scmp.le.s32.totalorder 1, %s11
    %p187 = scmp.lt.s32.totalorder %s11, 3
    %p188 = pnand %p186, %p187
    %p189 = pneg %p188
    // Predicated region
    $region37: #{decoder_block_v2_forward.1} parent=5 // pred_check
      _
    $region38: #{decoder_block_v2_forward.1} parent=5 // pred_check_branch
      %191 = sbr.rel (%p188) target = $region40
    $region39: #{decoder_block_v2_forward.1} parent=5 // pred_region
      %s192 = ssub.s32 %s11, 1
      %p193 = scmp.lt.s32.totalorder %s16, 1
      %s194 = scalar_select %p193, %s16, 1
      %s195 = smul.addr %s194, 10
      %s196 = smul.addr %s195, 4
      %s197 = scalar_lea.vmem %s0, %s196
      %p198 = pneg %p37
      %p199 = pneg %p34
      %p200 = pneg %p58
      %p201 = pneg %p55
      %p202 = pneg %p79
      %p203 = pneg %p76
      %p204 = pneg %p100
      %p205 = pneg %p97
      %p206 = pneg %p121
      %p207 = pneg %p118
      %p208 = pneg %p147
      %p209 = pneg %p144
      %p210 = scmp.lt.s32.totalorder %s16, 1
      %s211 = scalar_select %p210, %s16, 1
      %s212 = smul.addr %s211, 4
      %s213 = smul.addr %s212, 8
      %s214 = scalar_lea.vmem %s5, %s213
      %p215 = scmp.lt.s32.totalorder %s16, 1
      %s216 = scalar_select %p215, %s16, 1
      %s217 = smul.addr %s216, 10
      %s218 = smul.addr %s217, 4
      %s219 = scalar_lea.vmem %s0, %s218
      %p220 = scmp.lt.s32.totalorder %s16, 1
      %s221 = scalar_select %p220, %s16, 1
      %s222 = smul.addr %s221, 4
      %s223 = smul.addr %s222, 8
      %s224 = scalar_lea.vmem %s5, %s223
      %vm226 = vcmask 138240
      %227 = vst.msk [vmem:[#allocation2] sm:$0xff] %vm226, 0.0
      %vm228 = vcmask 277640
      %229 = vst.msk [vmem:[#allocation2 + $0x10] sm:$0xff] %vm228, 0.0
      %v230 = vld [vmem:[%s1] sm:$0xf]
      %v231 = vld [vmem:[%s219] sm:$0xff]
      %v232 = vld [vmem:[%s219 + $0x8] sm:$0xff]
      %v233 = vld [vmem:[%s219 + $0x10] sm:$0xff]
      %v234 = vld [vmem:[%s219 + $0x18] sm:$0xff]
      %v235 = vld [vmem:[%s219 + $0x20] sm:$0x33]
      %v236 = vld [vmem:[%s2] sm:$0xff]
      %238 = vset.pattern.permute.xlu0 0
      %239 = vperm.xlu0 %238, %v236
      %v240 = vpop.permute.xlu0 %239
      %v247 = vunpack.c.l.b16 %v231
      %v248 = vunpack.c.h.b16 %v231
      %v249 = vunpack.c.l.b16 %v232
      %v250 = vunpack.c.h.b16 %v232
      %v251 = vunpack.c.l.b16 %v233
      %v252 = vunpack.c.h.b16 %v233
      %v253 = vunpack.c.l.b16 %v234
      %v254 = vunpack.c.h.b16 %v234
      %v255 = vunpack.c.l.b16 %v235
      %v256 = vunpack.c.h.b16 %v235
      %v257 = vpack.c.b16 %v249, %v247
      %v258 = vpack.c.b16 %v250, %v248
      %v259 = vpack.c.b16 %v253, %v251
      %v260 = vpack.c.b16 %v254, %v252
      %v261 = vpack.c.b16 %v255, %v255
      %v262 = vpack.c.b16 %v256, %v256
      %vm267 = vcmask 293888
      %v269 = vsel %vm267, %v230, 0
      %vm271 = vcmask 1041408
      %v273 = vsel %vm271, %v261, 0
      %v276 = vsel %vm271, %v262, 0
      %278 = vmatprep.subr.bf16.mxu0 %v258
      %279 = vmatpush1.bf16.msra.mxu0 %v257
      %280 = vmatprep.subr.bf16.mxu0 %v260
      %281 = vmatpush1.bf16.msra.mxu0 %v259
      %282 = vmatprep.subr.bf16.mxu0 %v276
      %283 = vmatpush1.bf16.msra.mxu0 %v273
      %284 = vmatprep.subr.bf16.mxu0 0
      %285 = vmatpush1.bf16.msra.mxu0 0
      %286 = vmatprep.subr.bf16.mxu0 0
      %287 = vmatpush1.bf16.msra.mxu0 0
      %288 = vmatprep.subr.bf16.mxu0 0
      %289 = vmatpush1.bf16.msra.mxu0 0
      %290 = vmatprep.subr.bf16.mxu0 0
      %291 = vmatpush1.bf16.msra.mxu0 0
      %292 = vmatprep.subr.bf16.mxu0 0
      %293 = vmatpush1.bf16.msra.mxu0 0
      %294 = vmatprep.subr.bf16.mxu0 0
      %295 = vmatpush1.bf16.msra.mxu0 0
      %296 = vmatprep.subr.bf16.mxu0 0
      %297 = vmatpush1.bf16.msra.mxu0 0
      %298 = vmatprep.subr.bf16.mxu0 0
      %299 = vmatpush1.bf16.msra.mxu0 0
      %300 = vmatprep.subr.bf16.mxu0 0
      %301 = vmatpush1.bf16.msra.mxu0 0
      %302 = vmatprep.subr.bf16.mxu0 0
      %303 = vmatpush1.bf16.msra.mxu0 0
      %304 = vmatprep.subr.bf16.mxu0 0
      %305 = vmatpush1.bf16.msra.mxu0 0
      %306 = vmatprep.subr.bf16.mxu0 0
      %307 = vmatpush1.bf16.msra.mxu0 0
      %308 = vmatprep.subr.bf16.mxu0 0
      %309 = vmatpush1.bf16.msra.mxu0 0
      %310 = vmatprep.mubr.bf16.mxu0 0
      %311 = vmatmul.mubr.bf16.gmra.mrb[0].mxu0 %v269
      %v312 = vpop.f32.mrb[0].mxu0
      %v313 = vadd.f32 %v240, %v312
      %v314 = vpop.f32.mrb[0].mxu0
      %v315 = vadd.f32 %v240, %v314
      %v316 = vpop.f32.mrb[0].mxu0
      %v317 = vpop.f32.mrb[0].mxu0
      %318 = vdwg.mxu0
      %v319 = vmax.f32 %v313, 0.0
      %v320 = vmax.f32 %v315, 0.0
      %323 = vrot.lane.b32.xlu0 %v319, 17
      %v324 = vpop.permute.xlu0 %323
      %325 = vrot.lane.b32.xlu0 %v320, 17
      %v326 = vpop.permute.xlu0 %325
      %v327 = vsel %vm226, %v324, %v326
      %vm331 = vcmask 1047688
      %332 = vst.msk [vmem:[#allocation2] sm:$0xff] %vm331, %v324
      %333 = vst [vmem:[#allocation2 + $0x8] sm:$0xff] %v327
      %334 = vst.msk [vmem:[#allocation2 + $0x10] sm:$0xff] %vm226, %v326
      %v335 = vlaneseq
      %v336 = vand.u32 %v335, 127
      %v337 = vadd.s32 %v336, 128
      %v338 = vand.u32 %v336, 15
      %v339 = vand.u32 %v337, 15
      %vm340 = vcmp.gt.s32.totalorder %v338, 0
      %vm341 = vcmp.gt.s32.totalorder %v339, 0
      %vm342 = vcmp.lt.s32.totalorder %v338, 15
      %vm343 = vcmp.lt.s32.totalorder %v339, 15
      %v344 = vld [vmem:[#allocation2] sm:$0xff]
      %v345 = vld [vmem:[#allocation2 + $0x8] sm:$0xff]
      %v346 = vsel %vm340, %v344, 0.0
      %v347 = vsel %vm341, %v345, 0.0
      %348 = vst [vmem:[#allocation3] sm:$0xff] %v346
      %349 = vst [vmem:[#allocation3 + $0x8] sm:$0xff] %v347
      %v350 = vld [vmem:[#allocation2] sm:$0xff]
      %v351 = vld [vmem:[#allocation2 + $0x8] sm:$0xff]
      %v352 = vld [vmem:[#allocation2 + $0x10] sm:$0xff]
      %356 = vrot.lane.b32.xlu0 %v350, 127
      %v357 = vpop.permute.xlu0 %356
      %358 = vrot.lane.b32.xlu0 %v351, 127
      %v359 = vpop.permute.xlu0 %358
      %360 = vrot.lane.b32.xlu0 %v352, 127
      %v361 = vpop.permute.xlu0 %360
      %vm362 = vcmask 1039360
      %v363 = vsel %vm362, %v357, %v359
      %v364 = vsel %vm362, %v359, %v361
      %367 = vst [vmem:[#allocation3 + $0x10] sm:$0xff] %v363
      %368 = vst [vmem:[#allocation3 + $0x18] sm:$0xff] %v364
      %v369 = vld [vmem:[#allocation2] sm:$0xff]
      %v370 = vld [vmem:[#allocation2 + $0x8] sm:$0xff]
      %v371 = vld [vmem:[#allocation2 + $0x10] sm:$0xff]
      %375 = vrot.lane.b32.xlu0 %v369, 126
      %v376 = vpop.permute.xlu0 %375
      %377 = vrot.lane.b32.xlu0 %v370, 126
      %v378 = vpop.permute.xlu0 %377
      %379 = vrot.lane.b32.xlu0 %v371, 126
      %v380 = vpop.permute.xlu0 %379
      %vm381 = vcmask 1031168
      %v382 = vsel %vm381, %v376, %v378
      %v383 = vsel %vm381, %v378, %v380
      %v386 = vsel %vm342, %v382, 0.0
      %v387 = vsel %vm343, %v383, 0.0
      %388 = vst [vmem:[#allocation3 + $0x20] sm:$0xff] %v386
      %389 = vst [vmem:[#allocation3 + $0x28] sm:$0xff] %v387
      %v390 = vld [vmem:[#allocation2] sm:$0xff]
      %v391 = vld [vmem:[#allocation2 + $0x8] sm:$0xff]
      %v392 = vld [vmem:[#allocation2 + $0x10] sm:$0xff]
      %396 = vrot.lane.b32.xlu0 %v390, 112
      %v397 = vpop.permute.xlu0 %396
      %398 = vrot.lane.b32.xlu0 %v391, 112
      %v399 = vpop.permute.xlu0 %398
      %400 = vrot.lane.b32.xlu0 %v392, 112
      %v401 = vpop.permute.xlu0 %400
      %vm402 = vcmask 916480
      %v403 = vsel %vm402, %v397, %v399
      %v404 = vsel %vm402, %v399, %v401
      %v407 = vsel %vm340, %v403, 0.0
      %v408 = vsel %vm341, %v404, 0.0
      %409 = vst [vmem:[#allocation3 + $0x30] sm:$0xff] %v407
      %410 = vst [vmem:[#allocation3 + $0x38] sm:$0xff] %v408
      %v411 = vld [vmem:[#allocation2] sm:$0xff]
      %v412 = vld [vmem:[#allocation2 + $0x8] sm:$0xff]
      %v413 = vld [vmem:[#allocation2 + $0x10] sm:$0xff]
      %417 = vrot.lane.b32.xlu0 %v411, 111
      %v418 = vpop.permute.xlu0 %417
      %419 = vrot.lane.b32.xlu0 %v412, 111
      %v420 = vpop.permute.xlu0 %419
      %421 = vrot.lane.b32.xlu0 %v413, 111
      %v422 = vpop.permute.xlu0 %421
      %vm423 = vcmask 908288
      %v424 = vsel %vm423, %v418, %v420
      %v425 = vsel %vm423, %v420, %v422
      %428 = vst [vmem:[#allocation3 + $0x40] sm:$0xff] %v424
      %429 = vst [vmem:[#allocation3 + $0x48] sm:$0xff] %v425
      %v430 = vld [vmem:[#allocation2] sm:$0xff]
      %v431 = vld [vmem:[#allocation2 + $0x8] sm:$0xff]
      %v432 = vld [vmem:[#allocation2 + $0x10] sm:$0xff]
      %436 = vrot.lane.b32.xlu0 %v430, 110
      %v437 = vpop.permute.xlu0 %436
      %438 = vrot.lane.b32.xlu0 %v431, 110
      %v439 = vpop.permute.xlu0 %438
      %440 = vrot.lane.b32.xlu0 %v432, 110
      %v441 = vpop.permute.xlu0 %440
      %vm442 = vcmask 900096
      %v443 = vsel %vm442, %v437, %v439
      %v444 = vsel %vm442, %v439, %v441
      %v447 = vsel %vm342, %v443, 0.0
      %v448 = vsel %vm343, %v444, 0.0
      %449 = vst [vmem:[#allocation3 + $0x50] sm:$0xff] %v447
      %450 = vst [vmem:[#allocation3 + $0x58] sm:$0xff] %v448
      %v451 = vld [vmem:[#allocation2] sm:$0xff]
      %v452 = vld [vmem:[#allocation2 + $0x8] sm:$0xff]
      %v453 = vld [vmem:[#allocation2 + $0x10] sm:$0xff]
      %457 = vrot.lane.b32.xlu0 %v451, 96
      %v458 = vpop.permute.xlu0 %457
      %459 = vrot.lane.b32.xlu0 %v452, 96
      %v460 = vpop.permute.xlu0 %459
      %461 = vrot.lane.b32.xlu0 %v453, 96
      %v462 = vpop.permute.xlu0 %461
      %vm463 = vcmask 785408
      %v464 = vsel %vm463, %v458, %v460
      %v465 = vsel %vm463, %v460, %v462
      %v468 = vsel %vm340, %v464, 0.0
      %v469 = vsel %vm341, %v465, 0.0
      %470 = vst [vmem:[#allocation3 + $0x60] sm:$0xff] %v468
      %471 = vst [vmem:[#allocation3 + $0x68] sm:$0xff] %v469
      %v472 = vld [vmem:[#allocation2] sm:$0xff]
      %v473 = vld [vmem:[#allocation2 + $0x8] sm:$0xff]
      %v474 = vld [vmem:[#allocation2 + $0x10] sm:$0xff]
      %478 = vrot.lane.b32.xlu0 %v472, 95
      %v479 = vpop.permute.xlu0 %478
      %480 = vrot.lane.b32.xlu0 %v473, 95
      %v481 = vpop.permute.xlu0 %480
      %482 = vrot.lane.b32.xlu0 %v474, 95
      %v483 = vpop.permute.xlu0 %482
      %vm484 = vcmask 777216
      %v485 = vsel %vm484, %v479, %v481
      %v486 = vsel %vm484, %v481, %v483
      %489 = vst [vmem:[#allocation3 + $0x70] sm:$0xff] %v485
      %490 = vst [vmem:[#allocation3 + $0x78] sm:$0xff] %v486
      %v491 = vld [vmem:[#allocation2] sm:$0xff]
      %v492 = vld [vmem:[#allocation2 + $0x8] sm:$0xff]
      %v493 = vld [vmem:[#allocation2 + $0x10] sm:$0xff]
      %497 = vrot.lane.b32.xlu0 %v491, 94
      %v498 = vpop.permute.xlu0 %497
      %499 = vrot.lane.b32.xlu0 %v492, 94
      %v500 = vpop.permute.xlu0 %499
      %501 = vrot.lane.b32.xlu0 %v493, 94
      %v502 = vpop.permute.xlu0 %501
      %vm503 = vcmask 769024
      %v504 = vsel %vm503, %v498, %v500
      %v505 = vsel %vm503, %v500, %v502
      %v508 = vsel %vm342, %v504, 0.0
      %v509 = vsel %vm343, %v505, 0.0
      %510 = vst [vmem:[#allocation3 + $0x80] sm:$0xff] %v508
      %511 = vst [vmem:[#allocation3 + $0x88] sm:$0xff] %v509
      %v512 = vld [vmem:[#allocation3] sm:$0xff]
      %v513 = vld [vmem:[#allocation3 + $0x8] sm:$0xff]
      %v514 = vld [vmem:[#allocation3 + $0x10] sm:$0xff]
      %v515 = vld [vmem:[#allocation3 + $0x18] sm:$0xff]
      %v516 = vld [vmem:[#allocation3 + $0x20] sm:$0xff]
      %v517 = vld [vmem:[#allocation3 + $0x28] sm:$0xff]
      %v518 = vld [vmem:[#allocation3 + $0x30] sm:$0xff]
      %v519 = vld [vmem:[#allocation3 + $0x38] sm:$0xff]
      %v520 = vld [vmem:[#allocation3 + $0x40] sm:$0xff]
      %v521 = vld [vmem:[#allocation3 + $0x48] sm:$0xff]
      %v522 = vld [vmem:[#allocation3 + $0x50] sm:$0xff]
      %v523 = vld [vmem:[#allocation3 + $0x58] sm:$0xff]
      %v524 = vld [vmem:[#allocation3 + $0x60] sm:$0xff]
      %v525 = vld [vmem:[#allocation3 + $0x68] sm:$0xff]
      %v526 = vld [vmem:[#allocation3 + $0x70] sm:$0xff]
      %v527 = vld [vmem:[#allocation3 + $0x78] sm:$0xff]
      %v528 = vld [vmem:[#allocation3 + $0x80] sm:$0xff]
      %v529 = vld [vmem:[#allocation3 + $0x88] sm:$0xff]
      %v530 = vpack.c.bf16 %v514, %v512
      %v531 = vpack.c.bf16 %v515, %v513
      %v532 = vpack.c.bf16 %v518, %v516
      %v533 = vpack.c.bf16 %v519, %v517
      %v534 = vpack.c.bf16 %v522, %v520
      %v535 = vpack.c.bf16 %v523, %v521
      %v536 = vpack.c.bf16 %v526, %v524
      %v537 = vpack.c.bf16 %v527, %v525
      %v538 = vpack.c.bf16 %v528, %v528
      %v539 = vpack.c.bf16 %v529, %v529
      %v540 = vld [vmem:[%s3] sm:$0xf]
      %v541 = vld [vmem:[%s3 + $0x4] sm:$0xf]
      %v542 = vld [vmem:[%s4] sm:$0xff]
      %v543 = vld [vmem:[%s4 + $0x8] sm:$0xff]
      %545 = vset.pattern.permute.xlu0 0
      %546 = vperm.xlu0 %545, %v542
      %v547 = vpop.permute.xlu0 %546
      %550 = vset.pattern.permute.xlu0 0
      %551 = vperm.xlu0 %550, %v543
      %v552 = vpop.permute.xlu0 %551
      %v556 = vunpack.c.l.b16 %v540
      %v557 = vunpack.c.l.b16 %v541
      %v558 = vpack.c.b16 %v557, %v556
      %vm559 = vcmask 588800
      %v561 = vsel %vm559, %v558, 0
      %vm563 = vcmask 1043456
      %v565 = vsel %vm563, %v538, 0
      %v568 = vsel %vm563, %v539, 0
      %570 = vmatprep.subr.bf16.mxu0 %v531
      %571 = vmatpush1.bf16.msra.mxu0 %v530
      %572 = vmatprep.subr.bf16.mxu0 %v533
      %573 = vmatpush1.bf16.msra.mxu0 %v532
      %574 = vmatprep.subr.bf16.mxu0 %v535
      %575 = vmatpush1.bf16.msra.mxu0 %v534
      %576 = vmatprep.subr.bf16.mxu0 %v537
      %577 = vmatpush1.bf16.msra.mxu0 %v536
      %578 = vmatprep.subr.bf16.mxu0 %v568
      %579 = vmatpush1.bf16.msra.mxu0 %v565
      %580 = vmatprep.subr.bf16.mxu0 0
      %581 = vmatpush1.bf16.msra.mxu0 0
      %582 = vmatprep.subr.bf16.mxu0 0
      %583 = vmatpush1.bf16.msra.mxu0 0
      %584 = vmatprep.subr.bf16.mxu0 0
      %585 = vmatpush1.bf16.msra.mxu0 0
      %586 = vmatprep.subr.bf16.mxu0 0
      %587 = vmatpush1.bf16.msra.mxu0 0
      %588 = vmatprep.subr.bf16.mxu0 0
      %589 = vmatpush1.bf16.msra.mxu0 0
      %590 = vmatprep.subr.bf16.mxu0 0
      %591 = vmatpush1.bf16.msra.mxu0 0
      %592 = vmatprep.subr.bf16.mxu0 0
      %593 = vmatpush1.bf16.msra.mxu0 0
      %594 = vmatprep.subr.bf16.mxu0 0
      %595 = vmatpush1.bf16.msra.mxu0 0
      %596 = vmatprep.subr.bf16.mxu0 0
      %597 = vmatpush1.bf16.msra.mxu0 0
      %598 = vmatprep.subr.bf16.mxu0 0
      %599 = vmatpush1.bf16.msra.mxu0 0
      %600 = vmatprep.subr.bf16.mxu0 0
      %601 = vmatpush1.bf16.msra.mxu0 0
      %602 = vmatprep.mubr.bf16.mxu0 0
      %603 = vmatmul.mubr.bf16.gmra.mrb[0].mxu0 %v561
      %v604 = vpop.f32.mrb[0].mxu0
      %v605 = vadd.f32 %v547, %v604
      %v606 = vpop.f32.mrb[0].mxu0
      %v607 = vadd.f32 %v547, %v606
      %v608 = vpop.f32.mrb[0].mxu0
      %v609 = vadd.f32 %v552, %v608
      %v610 = vpop.f32.mrb[0].mxu0
      %v611 = vadd.f32 %v552, %v610
      %612 = vdwg.mxu0
      %v613 = vmax.f32 %v605, 0.0
      %v614 = vmax.f32 %v607, 0.0
      %v615 = vmax.f32 %v609, 0.0
      %v616 = vmax.f32 %v611, 0.0
      %617 = vst [vmem:[%s224] sm:$0xff] %v613
      %618 = vst [vmem:[%s224 + $0x8] sm:$0xff] %v614
      %619 = vst [vmem:[%s224 + $0x10] sm:$0xff] %v615
      %620 = vst [vmem:[%s224 + $0x18] sm:$0xff] %v616
      %p621 = scmp.lt.s32.totalorder %s16, 1
      %s622 = scalar_select %p621, %s16, 1
      %s623 = smul.addr %s622, 4
      %s624 = smul.addr %s623, 8
      %s625 = scalar_lea.vmem %s5, %s624
      // Predicated region
      $region41: #{decoder_block_v2_forward.1} parent=39 // pred_check
        %p626 = pneg %p144
      $region42: #{decoder_block_v2_forward.1} parent=39 // pred_check_branch
        %628 = sbr.rel (%p626) target = $region44
      $region43: #{decoder_block_v2_forward.1} parent=39 // pred_region
        _
      $region44: #{decoder_block_v2_forward.1} parent=39 // pred_fallthru
        _
    $region40: #{decoder_block_v2_forward.1} parent=5 // pred_fallthru
      _
    %p629 = scmp.le.s32.totalorder 2, %s11
    // Predicated region
    $region45: #{decoder_block_v2_forward.1} parent=5 // pred_check
      %p630 = pneg %p629
    $region46: #{decoder_block_v2_forward.1} parent=5 // pred_check_branch
      %632 = sbr.rel (%p630) target = $region48
    $region47: #{decoder_block_v2_forward.1} parent=5 // pred_region
      %s633 = ssub.s32 %s11, 2
      // Predicated region
      $region49: #{decoder_block_v2_forward.1} parent=47 // pred_check
        %p634 = pneg %p150
      $region50: #{decoder_block_v2_forward.1} parent=47 // pred_check_branch
        %636 = sbr.rel (%p634) target = $region52
      $region51: #{decoder_block_v2_forward.1} parent=47 // pred_region
        %p637 = scmp.lt.s32.totalorder %s17, 1
        %s638 = scalar_select %p637, %s17, 1
        %s639 = smul.addr %s638, 4
        %s640 = smul.addr %s639, 8
        %s641 = scalar_lea.vmem %s5, %s640
      $region52: #{decoder_block_v2_forward.1} parent=47 // pred_fallthru
        _
    $region48: #{decoder_block_v2_forward.1} parent=5 // pred_fallthru
      _
  $region6: #{decoder_block_v2_forward.1} parent=0 // loop_footer
    %s15 = sadd.s32 1, %s11
  $region7: #{decoder_block_v2_forward.1} parent=0 // loop_footer_branch
    %10 = sbr.rel target = $region3
  $region8: #{decoder_block_v2_forward.1} parent=0 // loop_exit
    _

</llo_original>
